<compile_context>
chip_gen: v6e
topology: v6e:2x2x1
jax: 0.10.0
libtpu: 0.0.40
codegen_flags: <defaults>
</compile_context>

<pallas_src>
import jax
import jax.numpy as jnp
import numpy as np
from jax.experimental import pallas as pl
from jax.experimental.pallas import tpu as pltpu

HIDDEN_DIM = 256  # fixed by the PyTorch module: nn.Linear(num_features, 256)


def _round_up(n, m):
    return ((n + m - 1) // m) * m


def _cdiv(a, b):
    return (a + b - 1) // b


def _choose_tile(B, block_b):
    """Pick a batch tile (multiple of 8) and grid length.

    Guarantees >= 2 grid steps when B >= 16 so the parallel batch axis can be
    sharded across both TensorCores on v7x.
    """
    tb_cap = max(8, _round_up(min(block_b, max(B, 1)), 8))
    n_tiles = _cdiv(B, tb_cap)
    if B >= 16 and n_tiles < 2:
        n_tiles = 2
    tb = _round_up(_cdiv(B, n_tiles), 8)
    n_tiles = _cdiv(B, tb)
    return tb, n_tiles


def _encoder_kernel(x_ref, w1_ref, b1_ref, w2_ref, b2_ref, o_ref):
    # In-kernel cast of x to the matmul dtype (free VPU work under DMA-bound
    # regime; avoids an extra HBM pass in the wrapper).
    x = x_ref[...].astype(w1_ref.dtype)
    # ---- Linear 1: (TB, D) @ (D, 256), f32 accumulation ----
    h = jnp.dot(x, w1_ref[...], preferred_element_type=jnp.float32)
    # ---- bias + ReLU epilogue (f32) ----
    h = jnp.maximum(h + b1_ref[...], 0.0)
    # ---- Linear 2: (TB, 256) @ (256, E) -> lane-dense output ----
    o = jnp.dot(h.astype(w2_ref.dtype), w2_ref[...],
                preferred_element_type=jnp.float32)
    o_ref[...] = (o + b2_ref[...]).astype(o_ref.dtype)


def transaction_feature_encoder(x, params, *, block_b=4096,
                                compute_dtype=jnp.float32,
                                out_dtype=jnp.float32):
    """Forward pass of TransactionFeatureEncoder: Linear -> ReLU -> Linear."""
    B, D = x.shape
    H = params["w1"].shape[1]
    E = params["w2"].shape[1]

    # Only the tiny resident weights are cast in the wrapper; x is cast
    # in-kernel. bf16 operands are full-rate on every generation (v5e/v6e/v7x).
    w1 = params["w1"].astype(compute_dtype)
    w2 = params["w2"].astype(compute_dtype)
    b1 = params["b1"].astype(jnp.float32)
    b2 = params["b2"].astype(jnp.float32)

    tb, n_tiles = _choose_tile(B, block_b)
    grid = (n_tiles,)

    # VMEM footprint estimate (lane-padded): double-buffered x and out tiles,
    # the (tb, H) f32 intermediate (+ its compute-dtype copy), resident
    # weights/biases. Used to raise the scoped VMEM limit just enough
    # (v5e default is only 16 MiB) while staying far below v7x's 64 MiB.
    x_itm = np.dtype(x.dtype).itemsize
    c_itm = np.dtype(compute_dtype).itemsize
    o_itm = np.dtype(out_dtype).itemsize
    vmem_bytes = (2 * tb * _round_up(D, 128) * x_itm          # x double-buffer
                  + 2 * tb * _round_up(E, 128) * o_itm        # out double-buffer
                  + tb * _round_up(H, 128) * (4 + c_itm)      # h (+ cast copy)
                  + (D * H + H * E) * c_itm                   # resident weights
                  + (H + E) * 4)                              # biases
    vmem_limit = int(min(max(int(vmem_bytes * 1.5), 16 << 20), 48 << 20))

    out = pl.pallas_call(
        _encoder_kernel,
        out_shape=jax.ShapeDtypeStruct((B, E), out_dtype),
        grid=grid,
        in_specs=[
            pl.BlockSpec((tb, D), lambda i: (i, 0)),   # x: tiled over batch
            pl.BlockSpec((D, H), lambda i: (0, 0)),    # w1: resident
            pl.BlockSpec((1, H), lambda i: (0, 0)),    # b1: resident
            pl.BlockSpec((H, E), lambda i: (0, 0)),    # w2: resident
            pl.BlockSpec((1, E), lambda i: (0, 0)),    # b2: resident
        ],
        out_specs=pl.BlockSpec((tb, E), lambda i: (i, 0)),
        compiler_params=pltpu.CompilerParams(
            dimension_semantics=("parallel",),
            vmem_limit_bytes=vmem_limit),
    )(x, w1, b1, w2, b2)

    return out


def init_params(key, num_features, final_embedding_dim=128):
    ks = jax.random.split(key, 4)
    bound1 = 1.0 / np.sqrt(num_features)
    bound2 = 1.0 / np.sqrt(HIDDEN_DIM)
    return {
        # nn.Linear(num_features, 256): weight (256, Din) -> stored (Din, 256)
        "w1": jax.random.uniform(ks[0], (num_features, HIDDEN_DIM),
                                 jnp.float32, -bound1, bound1),
        "b1": jax.random.uniform(ks[1], (1, HIDDEN_DIM),
                                 jnp.float32, -bound1, bound1),
        # nn.Linear(256, E): weight (E, 256) -> stored (256, E)
        "w2": jax.random.uniform(ks[2], (HIDDEN_DIM, final_embedding_dim),
                                 jnp.float32, -bound2, bound2),
        "b2": jax.random.uniform(ks[3], (1, final_embedding_dim),
                                 jnp.float32, -bound2, bound2),
    }


def reference(x, p, compute_dtype=jnp.float32):
    h = jnp.dot(x.astype(compute_dtype), p["w1"].astype(compute_dtype),
                preferred_element_type=jnp.float32) + p["b1"]
    h = jnp.maximum(h, 0.0)
    return jnp.dot(h.astype(compute_dtype), p["w2"].astype(compute_dtype),
                   preferred_element_type=jnp.float32) + p["b2"]


if __name__ == "__main__":
    NUM_FEATURES, EMB_DIM = 32, 128

    key = jax.random.PRNGKey(0)
    kx, kp = jax.random.split(key)
    params = init_params(kp, NUM_FEATURES, EMB_DIM)

    # ---- f32 path, B=16 -> two 8-row tiles (grid > 1, both TCs on v7x) ----
    x = jax.random.normal(kx, (16, NUM_FEATURES), jnp.float32)
    out = jax.block_until_ready(transaction_feature_encoder(x, params))
    ref = jax.block_until_ready(reference(x, params))
    assert out.shape == (16, EMB_DIM), out.shape
    np.testing.assert_allclose(np.asarray(out), np.asarray(ref),
                               rtol=1e-5, atol=1e-5)

    # ---- ragged batch (B=19): grid=2 with a masked partial last tile ----
    x2 = jax.random.normal(jax.random.PRNGKey(1), (19, NUM_FEATURES),
                           jnp.float32)
    out2 = jax.block_until_ready(transaction_feature_encoder(x2, params))
    ref2 = jax.block_until_ready(reference(x2, params))
    assert out2.shape == (19, EMB_DIM), out2.shape
    np.testing.assert_allclose(np.asarray(out2), np.asarray(ref2),
                               rtol=1e-5, atol=1e-5)

    # ---- bf16 matmul-operand path (full-rate MXU on all gens), loose tol ----
    out3 = jax.block_until_ready(
        transaction_feature_encoder(x, params, compute_dtype=jnp.bfloat16))
    ref3 = jax.block_until_ready(
        reference(x, params, compute_dtype=jnp.bfloat16))
    np.testing.assert_allclose(np.asarray(out3), np.asarray(ref3),
                               rtol=2e-2, atol=2e-2)

    print("KERNEL_OK")
</pallas_src>

<mosaic_0001>
module attributes {stable_mosaic.version = 11 : i64} {
  func.func @_encoder_kernel(%arg0: i32, %arg1: memref<8x32xf32, #tpu.memory_space<vmem>>, %arg2: memref<32x256xf32, #tpu.memory_space<vmem>>, %arg3: memref<1x256xf32, #tpu.memory_space<vmem>>, %arg4: memref<256x128xf32, #tpu.memory_space<vmem>>, %arg5: memref<1x128xf32, #tpu.memory_space<vmem>>, %arg6: memref<8x128xf32, #tpu.memory_space<vmem>>) attributes {dimension_semantics = [#tpu.dimension_semantics<parallel>], iteration_bounds = array<i64: 2>, scalar_prefetch = 0 : i64, scratch_operands = 0 : i64, tpu.core_type = #tpu.core_type<tc>, window_params = [{transform_indices = @transform_0, window_bounds = array<i64: 8, 32>}, {pipeline_mode = #tpu.pipeline_mode<synchronous>, transform_indices = @transform_1, window_bounds = array<i64: 32, 256>}, {pipeline_mode = #tpu.pipeline_mode<synchronous>, transform_indices = @transform_2, window_bounds = array<i64: 1, 256>}, {pipeline_mode = #tpu.pipeline_mode<synchronous>, transform_indices = @transform_3, window_bounds = array<i64: 256, 128>}, {pipeline_mode = #tpu.pipeline_mode<synchronous>, transform_indices = @transform_4, window_bounds = array<i64: 1, 128>}, {transform_indices = @transform_5, window_bounds = array<i64: 8, 128>}]} {
    %c0 = arith.constant 0 : index
    %c0_0 = arith.constant 0 : index
    %0 = vector.load %arg1[%c0, %c0_0] : memref<8x32xf32, #tpu.memory_space<vmem>>, vector<8x32xf32>
    %c0_1 = arith.constant 0 : index
    %c0_2 = arith.constant 0 : index
    %1 = vector.load %arg2[%c0_1, %c0_2] : memref<32x256xf32, #tpu.memory_space<vmem>>, vector<32x256xf32>
    %cst = arith.constant dense<0.000000e+00> : vector<8x256xf32>
    %2 = tpu.matmul %0, %1, %cst {dimension_numbers = #tpu.dot_dimension_numbers<[1], [0], [0], [1], [0, 0, 1, 1], [], []>} : vector<8x32xf32>, vector<32x256xf32>, vector<8x256xf32> -> vector<8x256xf32>
    %c0_3 = arith.constant 0 : index
    %c0_4 = arith.constant 0 : index
    %3 = vector.load %arg3[%c0_3, %c0_4] : memref<1x256xf32, #tpu.memory_space<vmem>>, vector<1x256xf32>
    %4 = vector.broadcast %3 : vector<1x256xf32> to vector<8x256xf32>
    %5 = arith.addf %2, %4 : vector<8x256xf32>
    %cst_5 = arith.constant 0.000000e+00 : f32
    %6 = vector.broadcast %cst_5 : f32 to vector<8x256xf32>
    %7 = arith.maximumf %5, %6 : vector<8x256xf32>
    %c0_6 = arith.constant 0 : index
    %c0_7 = arith.constant 0 : index
    %8 = vector.load %arg4[%c0_6, %c0_7] : memref<256x128xf32, #tpu.memory_space<vmem>>, vector<256x128xf32>
    %cst_8 = arith.constant dense<0.000000e+00> : vector<8x128xf32>
    %9 = tpu.matmul %7, %8, %cst_8 {dimension_numbers = #tpu.dot_dimension_numbers<[1], [0], [0], [1], [0, 0, 1, 1], [], []>} : vector<8x256xf32>, vector<256x128xf32>, vector<8x128xf32> -> vector<8x128xf32>
    %c0_9 = arith.constant 0 : index
    %c0_10 = arith.constant 0 : index
    %10 = vector.load %arg5[%c0_9, %c0_10] : memref<1x128xf32, #tpu.memory_space<vmem>>, vector<1x128xf32>
    %11 = vector.broadcast %10 : vector<1x128xf32> to vector<8x128xf32>
    %12 = arith.addf %9, %11 : vector<8x128xf32>
    %c0_11 = arith.constant 0 : index
    %c0_12 = arith.constant 0 : index
    %13 = vector.load %arg6[%c0_11, %c0_12] : memref<8x128xf32, #tpu.memory_space<vmem>>, vector<8x128xf32>
    tpu.vector_store %arg6[%c0_11, %c0_12], %12 {strides = array<i32>} : memref<8x128xf32, #tpu.memory_space<vmem>>, vector<8x128xf32>,
    return
  }
  func.func @transform_0(%arg0: i32) -> (i32, i32) {
    %c0_i32 = arith.constant 0 : i32
    %c0_i32_0 = arith.constant 0 : i32
    return %arg0, %c0_i32 : i32, i32
  }
  func.func @transform_1(%arg0: i32) -> (i32, i32) {
    %c0_i32 = arith.constant 0 : i32
    %c0_i32_0 = arith.constant 0 : i32
    %c0_i32_1 = arith.constant 0 : i32
    return %c0_i32, %c0_i32_0 : i32, i32
  }
  func.func @transform_2(%arg0: i32) -> (i32, i32) {
    %c0_i32 = arith.constant 0 : i32
    %c0_i32_0 = arith.constant 0 : i32
    %c0_i32_1 = arith.constant 0 : i32
    return %c0_i32, %c0_i32_0 : i32, i32
  }
  func.func @transform_3(%arg0: i32) -> (i32, i32) {
    %c0_i32 = arith.constant 0 : i32
    %c0_i32_0 = arith.constant 0 : i32
    %c0_i32_1 = arith.constant 0 : i32
    return %c0_i32, %c0_i32_0 : i32, i32
  }
  func.func @transform_4(%arg0: i32) -> (i32, i32) {
    %c0_i32 = arith.constant 0 : i32
    %c0_i32_0 = arith.constant 0 : i32
    %c0_i32_1 = arith.constant 0 : i32
    return %c0_i32, %c0_i32_0 : i32, i32
  }
  func.func @transform_5(%arg0: i32) -> (i32, i32) {
    %c0_i32 = arith.constant 0 : i32
    %c0_i32_0 = arith.constant 0 : i32
    return %arg0, %c0_i32 : i32, i32
  }
}

</mosaic_0001>

<llo_original>
// kernel: tpu_custom_call.1
$region0: #{tpu_custom_call.1}
  #allocation0 [shape = 'u32[]', space=smem, size = 0x4, offset = 0x4, fixed_abs, tag = 'smem constant byte address 0x4 - core index']
  #allocation1 [shape = 'u32[144,128]{1,0:T(1,128)}', space=vmem, size = 0x12000, scoped, tag = 'internal scratch']
  %s0 = inlined_call_operand.hbm [shape: f32[16,32], index: 0, kind: input, shape index: {}]
  %s1 = inlined_call_operand.hbm [shape: f32[32,256], index: 1, kind: input, shape index: {}]
  %s2 = inlined_call_operand.vmem [shape: f32[1,256], index: 2, kind: input, shape index: {}]
  %s3 = inlined_call_operand.hbm [shape: f32[256,128], index: 3, kind: input, shape index: {}]
  %s4 = inlined_call_operand.vmem [shape: f32[1,128], index: 4, kind: input, shape index: {}]
  %s5 = inlined_call_operand.hbm [shape: f32[16,128], index: 5, kind: output, shape index: {}]
  %s6 = sld [smem:[#allocation0]]
  $region65: #{tpu_custom_call.1} parent=0
    _
  %s8 = ssub.s32 1, %s6
  %s9 = scalar_select 0, %s8, %s6
  $region1: #{tpu_custom_call.1} parent=0
    #allocation2 [shape = 'u8[8192]{0}', space=vmem, size = 0x2000, scoped, tag = 'input window, operand 0']
    #allocation3 [shape = 's32[2]{0}', space=sflag, size = 0x8, scoped, tag = 'scoped memory for tpu_custom_call.1']
    #allocation4 [shape = 's32[2]{0}', space=sflag, size = 0x8, scoped, tag = 'scoped memory for tpu_custom_call.1']
    #allocation5 [shape = 'u8[32768]{0}', space=vmem, size = 0x8000, scoped, tag = 'input window, operand 1, single buffered']
    #allocation6 [shape = 's32[1]{0}', space=sflag, size = 0x4, scoped, tag = 'scoped memory for tpu_custom_call.1']
    #allocation7 [shape = 'u8[131072]{0}', space=vmem, size = 0x20000, scoped, tag = 'input window, operand 3, single buffered']
    #allocation8 [shape = 'u8[8192]{0}', space=vmem, size = 0x2000, scoped, tag = 'output window, operand 0']
    %10 = vsyncpa [#allocation3], 0
    %s11 = scalar_lea.sflag [#allocation3], 1
    %12 = vsyncpa %s11, 0
    %13 = vsyncpa [#allocation6], 0
    %14 = vsyncpa [#allocation4], 0
    %s15 = scalar_lea.sflag [#allocation4], 1
    %16 = vsyncpa %s15, 0
    loop: start=0, step=1, limit=4
    $region2: #{tpu_custom_call.1} parent=1 // loop_pre_header
      _
    $region3: #{tpu_custom_call.1} parent=1 // loop_header
      %s18 = sphi 0, %s22
      %p19 = scmp.ge.s32.totalorder %s18, 4
      %s28 = sphi 0, %s30
      %s31 = sphi 0, %s28
      %s32 = sphi 0, %s31
      %s48 = sphi 0, %s32
      %s52 = sphi 0, %s52
      %s54 = sphi 0, %s52
      %s55 = sphi 0, %s54
      %s69 = sphi 0, %s55
      %s73 = sphi 0, %s73
      %s75 = sphi 0, %s73
      %s76 = sphi 0, %s75
      %s90 = sphi 0, %s76
      %s94 = sphi 0, %s94
      %s96 = sphi 0, %s94
      %s97 = sphi 0, %s96
      %s111 = sphi 0, %s97
      %s115 = sphi 0, %s115
      %s117 = sphi 0, %s115
      %s118 = sphi 0, %s117
      %s132 = sphi 0, %s118
      %s138 = sphi 0, %s140
      %s141 = sphi 0, %s138
      %s142 = sphi 0, %s141
      %s158 = sphi 0, %s142
    $region4: #{tpu_custom_call.1} parent=1 // loop_header_branch
      %21 = sbr.rel (%p19) target = $region8
    $region5: #{tpu_custom_call.1} parent=1 // loop_body
      %s23 = ssub.s32 %s18, 1
      %s24 = ssub.s32 %s18, 2
      %s25 = sadd.s32 %s18, 1
      %s26 = ssub.s32 %s18, %s25
      %p27 = scmp.eq.s32.totalorder %s26, 0
      %s29 = sadd.s32 %s28, 1
      %s30 = scalar_select %p27, %s28, %s29
      %p33 = pneg %p27
      %p34 = scmp.eq.s32.totalorder %s18, 1
      %p35 = por %p33, %p34
      %p36 = scmp.ne.s32.totalorder %s28, %s31
      %p37 = scmp.eq.s32.totalorder %s18, 0
      %p38 = por %p36, %p37
      %p39 = scmp.ne.s32.totalorder %s28, %s31
      %p40 = scmp.eq.s32.totalorder %s23, 1
      %p41 = por %p39, %p40
      %p42 = scmp.ne.s32.totalorder %s31, %s32
      %p43 = scmp.eq.s32.totalorder %s23, 0
      %p44 = por %p42, %p43
      %p45 = scmp.ne.s32.totalorder %s31, %s32
      %p46 = scmp.eq.s32.totalorder %s24, 1
      %p47 = por %p45, %p46
      %p49 = scmp.ne.s32.totalorder %s32, %s48
      %p50 = scmp.eq.s32.totalorder %s24, 0
      %p51 = por %p49, %p50
      %s53 = sadd.s32 %s52, 1
      %p56 = scmp.eq.s32.totalorder %s18, 1
      %p57 = scmp.ne.s32.totalorder %s52, %s54
      %p58 = scmp.eq.s32.totalorder %s18, 0
      %p59 = por %p57, %p58
      %p60 = scmp.ne.s32.totalorder %s52, %s54
      %p61 = scmp.eq.s32.totalorder %s23, 1
      %p62 = por %p60, %p61
      %p63 = scmp.ne.s32.totalorder %s54, %s55
      %p64 = scmp.eq.s32.totalorder %s23, 0
      %p65 = por %p63, %p64
      %p66 = scmp.ne.s32.totalorder %s54, %s55
      %p67 = scmp.eq.s32.totalorder %s24, 1
      %p68 = por %p66, %p67
      %p70 = scmp.ne.s32.totalorder %s55, %s69
      %p71 = scmp.eq.s32.totalorder %s24, 0
      %p72 = por %p70, %p71
      %s74 = sadd.s32 %s73, 1
      %p77 = scmp.eq.s32.totalorder %s18, 1
      %p78 = scmp.ne.s32.totalorder %s73, %s75
      %p79 = scmp.eq.s32.totalorder %s18, 0
      %p80 = por %p78, %p79
      %p81 = scmp.ne.s32.totalorder %s73, %s75
      %p82 = scmp.eq.s32.totalorder %s23, 1
      %p83 = por %p81, %p82
      %p84 = scmp.ne.s32.totalorder %s75, %s76
      %p85 = scmp.eq.s32.totalorder %s23, 0
      %p86 = por %p84, %p85
      %p87 = scmp.ne.s32.totalorder %s75, %s76
      %p88 = scmp.eq.s32.totalorder %s24, 1
      %p89 = por %p87, %p88
      %p91 = scmp.ne.s32.totalorder %s76, %s90
      %p92 = scmp.eq.s32.totalorder %s24, 0
      %p93 = por %p91, %p92
      %s95 = sadd.s32 %s94, 1
      %p98 = scmp.eq.s32.totalorder %s18, 1
      %p99 = scmp.ne.s32.totalorder %s94, %s96
      %p100 = scmp.eq.s32.totalorder %s18, 0
      %p101 = por %p99, %p100
      %p102 = scmp.ne.s32.totalorder %s94, %s96
      %p103 = scmp.eq.s32.totalorder %s23, 1
      %p104 = por %p102, %p103
      %p105 = scmp.ne.s32.totalorder %s96, %s97
      %p106 = scmp.eq.s32.totalorder %s23, 0
      %p107 = por %p105, %p106
      %p108 = scmp.ne.s32.totalorder %s96, %s97
      %p109 = scmp.eq.s32.totalorder %s24, 1
      %p110 = por %p108, %p109
      %p112 = scmp.ne.s32.totalorder %s97, %s111
      %p113 = scmp.eq.s32.totalorder %s24, 0
      %p114 = por %p112, %p113
      %s116 = sadd.s32 %s115, 1
      %p119 = scmp.eq.s32.totalorder %s18, 1
      %p120 = scmp.ne.s32.totalorder %s115, %s117
      %p121 = scmp.eq.s32.totalorder %s18, 0
      %p122 = por %p120, %p121
      %p123 = scmp.ne.s32.totalorder %s115, %s117
      %p124 = scmp.eq.s32.totalorder %s23, 1
      %p125 = por %p123, %p124
      %p126 = scmp.ne.s32.totalorder %s117, %s118
      %p127 = scmp.eq.s32.totalorder %s23, 0
      %p128 = por %p126, %p127
      %p129 = scmp.ne.s32.totalorder %s117, %s118
      %p130 = scmp.eq.s32.totalorder %s24, 1
      %p131 = por %p129, %p130
      %p133 = scmp.ne.s32.totalorder %s118, %s132
      %p134 = scmp.eq.s32.totalorder %s24, 0
      %p135 = por %p133, %p134
      %s136 = ssub.s32 %s18, %s25
      %p137 = scmp.eq.s32.totalorder %s136, 0
      %s139 = sadd.s32 %s138, 1
      %s140 = scalar_select %p137, %s138, %s139
      %p143 = pneg %p137
      %p144 = scmp.eq.s32.totalorder %s18, 1
      %p145 = por %p143, %p144
      %p146 = scmp.ne.s32.totalorder %s138, %s141
      %p147 = scmp.eq.s32.totalorder %s18, 0
      %p148 = por %p146, %p147
      %p149 = scmp.ne.s32.totalorder %s138, %s141
      %p150 = scmp.eq.s32.totalorder %s23, 1
      %p151 = por %p149, %p150
      %p152 = scmp.ne.s32.totalorder %s141, %s142
      %p153 = scmp.eq.s32.totalorder %s23, 0
      %p154 = por %p152, %p153
      %p155 = scmp.ne.s32.totalorder %s141, %s142
      %p156 = scmp.eq.s32.totalorder %s24, 1
      %p157 = por %p155, %p156
      %p159 = scmp.ne.s32.totalorder %s142, %s158
      %p160 = scmp.eq.s32.totalorder %s24, 0
      %p161 = por %p159, %p160
      %p162 = scmp.le.s32.totalorder 1, %s18
      %p163 = scmp.lt.s32.totalorder %s18, 3
      %p164 = pnand %p162, %p163
      %p165 = pneg %p164
      // Predicated region
      $region9: #{tpu_custom_call.1} parent=5 // pred_check
        _
      $region10: #{tpu_custom_call.1} parent=5 // pred_check_branch
        %167 = sbr.rel (%p164) target = $region12
      $region11: #{tpu_custom_call.1} parent=5 // pred_region
        %s168 = ssub.s32 %s18, 1
        // Predicated region
        $region13: #{tpu_custom_call.1} parent=11 // pred_check
          %p169 = pneg %p65
        $region14: #{tpu_custom_call.1} parent=11 // pred_check_branch
          %171 = sbr.rel (%p169) target = $region16
        $region15: #{tpu_custom_call.1} parent=11 // pred_region
          %s173 = ssub.s32 1024, 1024
          %174 = vsyncadd [#allocation6], %s173
          %s175 = sshll.u32 [#allocation5], 4
          %s176 = int_to_ptr.vmem [resolvable:$true] %s175
          %181 = dma.hbm_to_vmem [thread:$0]  %s1, 1024, %s176, [#allocation6], 256, 256, 16
        $region16: #{tpu_custom_call.1} parent=11 // pred_fallthru
          _
        // Predicated region
        $region17: #{tpu_custom_call.1} parent=11 // pred_check
          %p182 = pneg %p86
        $region18: #{tpu_custom_call.1} parent=11 // pred_check_branch
          %184 = sbr.rel (%p182) target = $region20
        $region19: #{tpu_custom_call.1} parent=11 // pred_region
          _
        $region20: #{tpu_custom_call.1} parent=11 // pred_fallthru
          _
        // Predicated region
        $region21: #{tpu_custom_call.1} parent=11 // pred_check
          %p185 = pneg %p107
        $region22: #{tpu_custom_call.1} parent=11 // pred_check_branch
          %187 = sbr.rel (%p185) target = $region24
        $region23: #{tpu_custom_call.1} parent=11 // pred_region
          %s189 = ssub.s32 4096, 4096
          %190 = vsyncadd [#allocation6], %s189
          %s191 = sshll.u32 [#allocation7], 4
          %s192 = int_to_ptr.vmem [resolvable:$true] %s191
          %197 = dma.hbm_to_vmem [thread:$0]  %s3, 4096, %s192, [#allocation6], 128, 128, 8
        $region24: #{tpu_custom_call.1} parent=11 // pred_fallthru
          _
        // Predicated region
        $region25: #{tpu_custom_call.1} parent=11 // pred_check
          %p198 = pneg %p128
        $region26: #{tpu_custom_call.1} parent=11 // pred_check_branch
          %200 = sbr.rel (%p198) target = $region28
        $region27: #{tpu_custom_call.1} parent=11 // pred_region
          _
        $region28: #{tpu_custom_call.1} parent=11 // pred_fallthru
          _
      $region12: #{tpu_custom_call.1} parent=5 // pred_fallthru
        _
      %p201 = scmp.lt.s32.totalorder %s18, 2
      // Predicated region
      $region29: #{tpu_custom_call.1} parent=5 // pred_check
        %p202 = pneg %p201
      $region30: #{tpu_custom_call.1} parent=5 // pred_check_branch
        %204 = sbr.rel (%p202) target = $region32
      $region31: #{tpu_custom_call.1} parent=5 // pred_region
        // Predicated region
        $region33: #{tpu_custom_call.1} parent=31 // pred_check
          %p205 = pneg %p38
        $region34: #{tpu_custom_call.1} parent=31 // pred_check_branch
          %207 = sbr.rel (%p205) target = $region36
        $region35: #{tpu_custom_call.1} parent=31 // pred_region
          %s208 = sand.u32 %s28, 1
          %s209 = scalar_lea.sflag [#allocation3], %s208
          %s210 = sand.u32 %s28, 1
          %s211 = smul.addr %s210, 8
          %s212 = scalar_lea.vmem [#allocation2], %s211
          %s214 = ssub.s32 128, 128
          %215 = vsyncadd %s209, %s214
          %s216 = smul.addr %s18, 128
          %s217 = scalar_lea.hbm %s0, %s216
          %s219 = sshll.u32 %s212, 4
          %s220 = int_to_ptr.vmem [resolvable:$true] %s219
          %222 = dma.hbm_to_vmem [thread:$0]  %s217, 128, %s220, %s209
        $region36: #{tpu_custom_call.1} parent=31 // pred_fallthru
          _
      $region32: #{tpu_custom_call.1} parent=5 // pred_fallthru
        _
      %p223 = scmp.le.s32.totalorder 1, %s18
      %p224 = scmp.lt.s32.totalorder %s18, 3
      %p225 = pnand %p223, %p224
      %p226 = pneg %p225
      // Predicated region
      $region37: #{tpu_custom_call.1} parent=5 // pred_check
        _
      $region38: #{tpu_custom_call.1} parent=5 // pred_check_branch
        %228 = sbr.rel (%p225) target = $region40
      $region39: #{tpu_custom_call.1} parent=5 // pred_region
        %s229 = ssub.s32 %s18, 1
        %s230 = sand.u32 %s31, 1
        %s231 = scalar_lea.sflag [#allocation3], %s230
        %s232 = sand.u32 %s31, 1
        %s233 = smul.addr %s232, 8
        %s234 = scalar_lea.vmem [#allocation2], %s233
        // Predicated region
        $region41: #{tpu_custom_call.1} parent=39 // pred_check
          %p235 = pneg %p44
        $region42: #{tpu_custom_call.1} parent=39 // pred_check_branch
          %237 = sbr.rel (%p235) target = $region44
        $region43: #{tpu_custom_call.1} parent=39 // pred_region
          %238 = dma.done %s231, 128
        $region44: #{tpu_custom_call.1} parent=39 // pred_fallthru
          _
        // Predicated region
        $region45: #{tpu_custom_call.1} parent=39 // pred_check
          %p239 = pneg %p65
        $region46: #{tpu_custom_call.1} parent=39 // pred_check_branch
          %241 = sbr.rel (%p239) target = $region48
        $region47: #{tpu_custom_call.1} parent=39 // pred_region
          %242 = dma.done [#allocation6], 1024
        $region48: #{tpu_custom_call.1} parent=39 // pred_fallthru
          _
        // Predicated region
        $region49: #{tpu_custom_call.1} parent=39 // pred_check
          %p243 = pneg %p107
        $region50: #{tpu_custom_call.1} parent=39 // pred_check_branch
          %245 = sbr.rel (%p243) target = $region52
        $region51: #{tpu_custom_call.1} parent=39 // pred_region
          %246 = dma.done [#allocation6], 4096
        $region52: #{tpu_custom_call.1} parent=39 // pred_fallthru
          _
        %s247 = sand.u32 %s31, 1
        %s248 = scalar_lea.sflag [#allocation3], %s247
        %s249 = sand.u32 %s31, 1
        %s250 = smul.addr %s249, 8
        %s251 = scalar_lea.vmem [#allocation2], %s250
        %p252 = pneg %p44
        %p253 = pneg %p41
        %p254 = pneg %p65
        %p255 = pneg %p62
        %p256 = pneg %p86
        %p257 = pneg %p83
        %p258 = pneg %p107
        %p259 = pneg %p104
        %p260 = pneg %p128
        %p261 = pneg %p125
        %p262 = pneg %p154
        %p263 = pneg %p151
        %s264 = sand.u32 %s141, 1
        %s265 = scalar_lea.sflag [#allocation4], %s264
        %s266 = sand.u32 %s141, 1
        %s267 = smul.addr %s266, 8
        %s268 = scalar_lea.vmem [#allocation8], %s267
        %v269 = vld [vmem:[%s234] sm:$0xff]
        %v270 = vld [vmem:[#allocation5] sm:$0xff]
        %v271 = vld [vmem:[#allocation5 + $0x8] sm:$0xff]
        %v272 = vld [vmem:[#allocation5 + $0x10] sm:$0xff]
        %v273 = vld [vmem:[#allocation5 + $0x18] sm:$0xff]
        %v274 = vld [vmem:[#allocation5 + $0x20] sm:$0xff]
        %v275 = vld [vmem:[#allocation5 + $0x28] sm:$0xff]
        %v276 = vld [vmem:[#allocation5 + $0x30] sm:$0xff]
        %v277 = vld [vmem:[#allocation5 + $0x38] sm:$0xff]
        %v278 = vld [vmem:[%s2] sm:$0x3]
        %v280 = vlaneseq
        %v281 = vshrl.u32 %v280, 7
        %v282 = vsub.s32 0, %v281
        %v283 = vrot.slane %v278, %v282
        %v284 = vlaneseq
        %v285 = vshrl.u32 %v284, 7
        %v286 = vsub.s32 1, %v285
        %v287 = vrot.slane %v278, %v286
        %vm290 = vcmask 261120
        %v292 = vsel %vm290, %v269, 0
        %294 = vmatprep.subr.mxu0 0.0
        %295 = vmatpush1.msra.mxu0 0.0
        %296 = vmatprep.subr.mxu0 0.0
        %297 = vmatpush1.msra.mxu0 0.0
        %298 = vmatprep.subr.mxu0 0.0
        %299 = vmatpush1.msra.mxu0 0.0
        %300 = vmatprep.subr.mxu0 0.0
        %301 = vmatpush1.msra.mxu0 0.0
        %302 = vmatprep.subr.mxu0 0.0
        %303 = vmatpush1.msra.mxu0 0.0
        %304 = vmatprep.subr.mxu0 0.0
        %305 = vmatpush1.msra.mxu0 0.0
        %306 = vmatprep.subr.mxu0 0.0
        %307 = vmatpush1.msra.mxu0 0.0
        %308 = vmatprep.subr.mxu0 0.0
        %309 = vmatpush1.msra.mxu0 0.0
        %310 = vmatprep.subr.mxu0 0.0
        %311 = vmatpush1.msra.mxu0 0.0
        %312 = vmatprep.subr.mxu0 0.0
        %313 = vmatpush1.msra.mxu0 0.0
        %314 = vmatprep.subr.mxu0 0.0
        %315 = vmatpush1.msra.mxu0 0.0
        %316 = vmatprep.subr.mxu0 0.0
        %317 = vmatpush1.msra.mxu0 0.0
        %318 = vmatprep.subr.mxu0 %v277
        %319 = vmatpush1.msra.mxu0 %v276
        %320 = vmatprep.subr.mxu0 %v275
        %321 = vmatpush1.msra.mxu0 %v274
        %322 = vmatprep.subr.mxu0 %v273
        %323 = vmatpush1.msra.mxu0 %v272
        %324 = vmatprep.subr.mxu0 %v271
        %325 = vmatpush1.msra.mxu0 %v270
        %326 = vmatprep.subr.mxu0 0.0
        %327 = vmatpush2.msra.mxu0 0.0
        %328 = vmatprep.subr.mxu0 0.0
        %329 = vmatpush2.msra.mxu0 0.0
        %330 = vmatprep.subr.mxu0 0.0
        %331 = vmatpush2.msra.mxu0 0.0
        %332 = vmatprep.subr.mxu0 0.0
        %333 = vmatpush2.msra.mxu0 0.0
        %334 = vmatprep.subr.mxu0 0.0
        %335 = vmatpush2.msra.mxu0 0.0
        %336 = vmatprep.subr.mxu0 0.0
        %337 = vmatpush2.msra.mxu0 0.0
        %338 = vmatprep.subr.mxu0 0.0
        %339 = vmatpush2.msra.mxu0 0.0
        %340 = vmatprep.subr.mxu0 0.0
        %341 = vmatpush2.msra.mxu0 0.0
        %342 = vmatprep.subr.mxu0 0.0
        %343 = vmatpush2.msra.mxu0 0.0
        %344 = vmatprep.subr.mxu0 0.0
        %345 = vmatpush2.msra.mxu0 0.0
        %346 = vmatprep.subr.mxu0 0.0
        %347 = vmatpush2.msra.mxu0 0.0
        %348 = vmatprep.subr.mxu0 0.0
        %349 = vmatpush2.msra.mxu0 0.0
        %350 = vmatprep.subr.mxu0 0.0
        %351 = vmatpush2.msra.mxu0 0.0
        %352 = vmatprep.subr.mxu0 0.0
        %353 = vmatpush2.msra.mxu0 0.0
        %354 = vmatprep.subr.mxu0 0.0
        %355 = vmatpush2.msra.mxu0 0.0
        %356 = vmatprep.subr.mxu0 0.0
        %357 = vmatpush2.msra.mxu0 0.0
        %358 = vmatprep.mubr.f32.mxu0 0.0
        %359 = vmatmul.mubr.f32.gmra.mxu0 %v292
        %v360 = vpop.f32.mrf.mxu0
        %v361 = vadd.f32 %v283, %v360
        %v362 = vpop.f32.mrf.mxu0
        %v363 = vadd.f32 %v287, %v362
        %364 = vdwg.mxu0
        %v365 = vmax.f32 %v361, 0.0
        %v366 = vmax.f32 %v363, 0.0
        %v367 = vld [vmem:[#allocation7] sm:$0xff]
        %v368 = vld [vmem:[#allocation7 + $0x8] sm:$0xff]
        %v369 = vld [vmem:[#allocation7 + $0x10] sm:$0xff]
        %v370 = vld [vmem:[#allocation7 + $0x18] sm:$0xff]
        %v371 = vld [vmem:[#allocation7 + $0x20] sm:$0xff]
        %v372 = vld [vmem:[#allocation7 + $0x28] sm:$0xff]
        %v373 = vld [vmem:[#allocation7 + $0x30] sm:$0xff]
        %v374 = vld [vmem:[#allocation7 + $0x38] sm:$0xff]
        %v375 = vld [vmem:[#allocation7 + $0x40] sm:$0xff]
        %v376 = vld [vmem:[#allocation7 + $0x48] sm:$0xff]
        %v377 = vld [vmem:[#allocation7 + $0x50] sm:$0xff]
        %v378 = vld [vmem:[#allocation7 + $0x58] sm:$0xff]
        %v379 = vld [vmem:[#allocation7 + $0x60] sm:$0xff]
        %v380 = vld [vmem:[#allocation7 + $0x68] sm:$0xff]
        %v381 = vld [vmem:[#allocation7 + $0x70] sm:$0xff]
        %v382 = vld [vmem:[#allocation7 + $0x78] sm:$0xff]
        %v383 = vld [vmem:[#allocation7 + $0x80] sm:$0xff]
        %v384 = vld [vmem:[#allocation7 + $0x88] sm:$0xff]
        %v385 = vld [vmem:[#allocation7 + $0x90] sm:$0xff]
        %v386 = vld [vmem:[#allocation7 + $0x98] sm:$0xff]
        %v387 = vld [vmem:[#allocation7 + $0xa0] sm:$0xff]
        %v388 = vld [vmem:[#allocation7 + $0xa8] sm:$0xff]
        %v389 = vld [vmem:[#allocation7 + $0xb0] sm:$0xff]
        %v390 = vld [vmem:[#allocation7 + $0xb8] sm:$0xff]
        %v391 = vld [vmem:[#allocation7 + $0xc0] sm:$0xff]
        %v392 = vld [vmem:[#allocation7 + $0xc8] sm:$0xff]
        %v393 = vld [vmem:[#allocation7 + $0xd0] sm:$0xff]
        %v394 = vld [vmem:[#allocation7 + $0xd8] sm:$0xff]
        %v395 = vld [vmem:[#allocation7 + $0xe0] sm:$0xff]
        %v396 = vld [vmem:[#allocation7 + $0xe8] sm:$0xff]
        %v397 = vld [vmem:[#allocation7 + $0xf0] sm:$0xff]
        %v398 = vld [vmem:[#allocation7 + $0xf8] sm:$0xff]
        %v399 = vld [vmem:[%s4] sm:$0x1]
        %v401 = vlaneseq
        %v402 = vshrl.u32 %v401, 7
        %v403 = vsub.s32 0, %v402
        %v404 = vrot.slane %v399, %v403
        %406 = vmatprep.subr.mxu0 0.0
        %407 = vmatpush1.msra.mxu0 %v382
        %408 = vmatprep.subr.mxu0 0.0
        %409 = vmatpush1.msra.mxu0 %v381
        %410 = vmatprep.subr.mxu0 0.0
        %411 = vmatpush1.msra.mxu0 %v380
        %412 = vmatprep.subr.mxu0 0.0
        %413 = vmatpush1.msra.mxu0 %v379
        %414 = vmatprep.subr.mxu0 0.0
        %415 = vmatpush1.msra.mxu0 %v378
        %416 = vmatprep.subr.mxu0 0.0
        %417 = vmatpush1.msra.mxu0 %v377
        %418 = vmatprep.subr.mxu0 0.0
        %419 = vmatpush1.msra.mxu0 %v376
        %420 = vmatprep.subr.mxu0 0.0
        %421 = vmatpush1.msra.mxu0 %v375
        %422 = vmatprep.subr.mxu0 0.0
        %423 = vmatpush1.msra.mxu0 %v374
        %424 = vmatprep.subr.mxu0 0.0
        %425 = vmatpush1.msra.mxu0 %v373
        %426 = vmatprep.subr.mxu0 0.0
        %427 = vmatpush1.msra.mxu0 %v372
        %428 = vmatprep.subr.mxu0 0.0
        %429 = vmatpush1.msra.mxu0 %v371
        %430 = vmatprep.subr.mxu0 0.0
        %431 = vmatpush1.msra.mxu0 %v370
        %432 = vmatprep.subr.mxu0 0.0
        %433 = vmatpush1.msra.mxu0 %v369
        %434 = vmatprep.subr.mxu0 0.0
        %435 = vmatpush1.msra.mxu0 %v368
        %436 = vmatprep.subr.mxu0 0.0
        %437 = vmatpush1.msra.mxu0 %v367
        %438 = vmatprep.subr.mxu0 0.0
        %439 = vmatpush2.msra.mxu0 %v398
        %440 = vmatprep.subr.mxu0 0.0
        %441 = vmatpush2.msra.mxu0 %v397
        %442 = vmatprep.subr.mxu0 0.0
        %443 = vmatpush2.msra.mxu0 %v396
        %444 = vmatprep.subr.mxu0 0.0
        %445 = vmatpush2.msra.mxu0 %v395
        %446 = vmatprep.subr.mxu0 0.0
        %447 = vmatpush2.msra.mxu0 %v394
        %448 = vmatprep.subr.mxu0 0.0
        %449 = vmatpush2.msra.mxu0 %v393
        %450 = vmatprep.subr.mxu0 0.0
        %451 = vmatpush2.msra.mxu0 %v392
        %452 = vmatprep.subr.mxu0 0.0
        %453 = vmatpush2.msra.mxu0 %v391
        %454 = vmatprep.subr.mxu0 0.0
        %455 = vmatpush2.msra.mxu0 %v390
        %456 = vmatprep.subr.mxu0 0.0
        %457 = vmatpush2.msra.mxu0 %v389
        %458 = vmatprep.subr.mxu0 0.0
        %459 = vmatpush2.msra.mxu0 %v388
        %460 = vmatprep.subr.mxu0 0.0
        %461 = vmatpush2.msra.mxu0 %v387
        %462 = vmatprep.subr.mxu0 0.0
        %463 = vmatpush2.msra.mxu0 %v386
        %464 = vmatprep.subr.mxu0 0.0
        %465 = vmatpush2.msra.mxu0 %v385
        %466 = vmatprep.subr.mxu0 0.0
        %467 = vmatpush2.msra.mxu0 %v384
        %468 = vmatprep.subr.mxu0 0.0
        %469 = vmatpush2.msra.mxu0 %v383
        %470 = vmatprep.mubr.f32.mxu0 %v366
        %471 = vmatmul.mubr.f32.gmra.mxu0 %v365
        %v472 = vpop.f32.mrf.mxu0
        %v473 = vadd.f32 %v404, %v472
        %v474 = vpop.f32.mrf.mxu0
        %475 = vdwg.mxu0
        %476 = vst [vmem:[%s268] sm:$0xff] %v473
        %s477 = sand.u32 %s141, 1
        %s478 = scalar_lea.sflag [#allocation4], %s477
        %s479 = sand.u32 %s141, 1
        %s480 = smul.addr %s479, 8
        %s481 = scalar_lea.vmem [#allocation8], %s480
        // Predicated region
        $region53: #{tpu_custom_call.1} parent=39 // pred_check
          %p482 = pneg %p151
        $region54: #{tpu_custom_call.1} parent=39 // pred_check_branch
          %484 = sbr.rel (%p482) target = $region56
        $region55: #{tpu_custom_call.1} parent=39 // pred_region
          %s486 = ssub.s32 128, 128
          %487 = vsyncadd %s478, %s486
          %s488 = smul.addr %s23, 128
          %s489 = scalar_lea.hbm %s5, %s488
          %s491 = sshll.u32 %s481, 4
          %s492 = int_to_ptr.vmem [resolvable:$true] %s491
          %494 = dma.vmem_to_hbm [thread:$0]  %s492, 128, %s489, %s478
        $region56: #{tpu_custom_call.1} parent=39 // pred_fallthru
          _
      $region40: #{tpu_custom_call.1} parent=5 // pred_fallthru
        _
      %p495 = scmp.le.s32.totalorder 2, %s18
      // Predicated region
      $region57: #{tpu_custom_call.1} parent=5 // pred_check
        %p496 = pneg %p495
      $region58: #{tpu_custom_call.1} parent=5 // pred_check_branch
        %498 = sbr.rel (%p496) target = $region60
      $region59: #{tpu_custom_call.1} parent=5 // pred_region
        %s499 = ssub.s32 %s18, 2
        // Predicated region
        $region61: #{tpu_custom_call.1} parent=59 // pred_check
          %p500 = pneg %p157
        $region62: #{tpu_custom_call.1} parent=59 // pred_check_branch
          %502 = sbr.rel (%p500) target = $region64
        $region63: #{tpu_custom_call.1} parent=59 // pred_region
          %s503 = sand.u32 %s142, 1
          %s504 = scalar_lea.sflag [#allocation4], %s503
          %s505 = sand.u32 %s142, 1
          %s506 = smul.addr %s505, 8
          %s507 = scalar_lea.vmem [#allocation8], %s506
          %508 = dma.done %s504, 128
        $region64: #{tpu_custom_call.1} parent=59 // pred_fallthru
          _
      $region60: #{tpu_custom_call.1} parent=5 // pred_fallthru
        _
    $region6: #{tpu_custom_call.1} parent=1 // loop_footer
      %s22 = sadd.s32 1, %s18
    $region7: #{tpu_custom_call.1} parent=1 // loop_footer_branch
      %17 = sbr.rel target = $region3
    $region8: #{tpu_custom_call.1} parent=1 // loop_exit
      _
    %509 = vsyncpa [#allocation3], 1
    %s510 = scalar_lea.sflag [#allocation3], 1
    %511 = vsyncpa %s510, 1
    %512 = vsyncpa [#allocation6], 1
    %513 = vsyncpa [#allocation4], 1
    %s514 = scalar_lea.sflag [#allocation4], 1
    %515 = vsyncpa %s514, 1

</llo_original>
